<compile_context>
chip_gen: v7x
topology: tpu7x:2x2x1
jax: 0.10.0
libtpu: 0.0.40
codegen_flags: <defaults>
</compile_context>

<pallas_src>
import functools

import jax
import jax.numpy as jnp
from jax import lax
from jax.experimental import pallas as pl
from jax.experimental.pallas import tpu as pltpu


_NEG_BIG = -1e30  # bias fill for padded seq positions -> exp underflows to exactly 0.0


def _attention_kernel(x_ref, wt_ref, b_ref, out_ref, attn_ref, *, approx_recip):
    tb, Cp, Lp = x_ref.shape
    n_chunks = Cp // 8

    # logits[r, l] = sum_c x[r, c, l] * W[l, c] + bias[l]
    # Accumulate over 8-sublane channel chunks: live temp is (tb, 8, Lp), never the
    # full (tb, Cp, Lp) product (review item: keep the live set at ~(tb, Lp)).
    def body(c, acc):
        c0 = pl.multiple_of(c * 8, 8)
        xc = x_ref[:, pl.ds(c0, 8), :].astype(jnp.float32)      # (tb, 8, Lp)
        wc = wt_ref[pl.ds(c0, 8), :].astype(jnp.float32)        # (8, Lp)
        return acc + jnp.sum(xc * wc[None, :, :], axis=1)       # sublane reduce (XLU)

    logits = lax.fori_loop(0, n_chunks, body,
                           jnp.zeros((tb, Lp), jnp.float32), unroll=True)
    logits = logits + b_ref[...].astype(jnp.float32)            # (tb, Lp)

    # Softmax over the sequence (lane) axis.
    m = jnp.max(logits, axis=-1, keepdims=True)
    e = jnp.exp(logits - m)
    s = jnp.sum(e, axis=-1, keepdims=True)
    if approx_recip:
        attn = e * pl.reciprocal(s, approx=True)   # EUP slot; frees VALU
    else:
        attn = e / s                               # exact f32 parity with PyTorch

    # Reweight features: broadcast attention over the channel (sublane) axis.
    out_ref[...] = (x_ref[...] * attn.astype(x_ref.dtype)[:, None, :]).astype(out_ref.dtype)
    attn_ref[...] = attn                           # (tb, Lp) lane-dense f32


def attention_forward(seq_feature, weight, bias, *, io_dtype=None, tb=None):
    """seq_feature: (B, C, L). weight: (L, C) (stacked fc_i). bias: (L,).

    Returns (out (B, C, L) in io_dtype, attn_weight2 (B, L) f32), matching the
    PyTorch module. io_dtype=jnp.bfloat16 halves HBM traffic (mem-bound kernel).
    """
    B, C, L = seq_feature.shape
    assert weight.shape == (L, C) and bias.shape == (L,)

    io_dtype = jnp.dtype(io_dtype) if io_dtype is not None else jnp.dtype(seq_feature.dtype)
    io_sz = io_dtype.itemsize
    approx_recip = io_dtype != jnp.dtype(jnp.float32)

    # Hardware-aligned extents: channels -> sublanes (x8), seq -> lanes (x128).
    Cp = ((C + 7) // 8) * 8
    Lp = -(-L // 128) * 128

    x = seq_feature
    wt = weight.T                                    # (C, L): seq on the lane axis
    b = bias.astype(jnp.float32)
    if (Cp, Lp) != (C, L):
        x = jnp.pad(x, ((0, 0), (0, Cp - C), (0, Lp - L)))
        wt = jnp.pad(wt, ((0, Cp - C), (0, Lp - L)))
        b = jnp.pad(b, (0, Lp - L), constant_values=_NEG_BIG)
    x = x.astype(io_dtype)
    wt = wt.astype(io_dtype)
    b = b.reshape(1, Lp)

    # ---- VMEM-budget-derived batch tile + explicit vmem limit ---------------
    try:
        vmem_cap = int(pltpu.get_tpu_info().vmem_capacity_bytes)
    except Exception:
        vmem_cap = 64 << 20                          # conservative (v7x-sized) fallback
    budget = min(vmem_cap * 5 // 8, 96 << 20)        # ~40 MiB v7x, ~80 MiB v5e/v6e

    if tb is None:
        per_row = (4 * Cp * Lp * io_sz               # x + out, double-buffered
                   + 2 * Lp * 4                      # attn output, double-buffered
                   + 10 * Lp * 4)                    # in-kernel f32 temps (chunk/logits/attn)
        fixed = 2 * (Cp * Lp * io_sz + Lp * 4) + (1 << 20)   # resident wt/bias + slack
        avail = max(budget * 3 // 4 - fixed, per_row)
        tb = max(8, (avail // per_row) // 8 * 8)
        tb = min(tb, B)
        if B >= 16:
            # Keep >= 2 grid steps so the "parallel" axis shards across v7x's 2 TCs.
            half = (-(-B // 2) + 7) // 8 * 8
            tb = min(tb, half)
    else:
        tb = min(int(tb), B)
    if tb < B:
        tb = max(8, (tb // 8) * 8)                   # sublane-aligned attn tile
    tb = min(tb, B)

    grid = (pl.cdiv(B, tb),)

    cost = pl.CostEstimate(
        flops=3 * B * Cp * Lp,
        transcendentals=B * Lp,
        bytes_accessed=2 * B * Cp * Lp * io_sz + B * Lp * 4 + Cp * Lp * io_sz + Lp * 4,
    )

    kernel = functools.partial(_attention_kernel, approx_recip=approx_recip)

    out_p, attn_p = pl.pallas_call(
        kernel,
        out_shape=(
            jax.ShapeDtypeStruct((B, Cp, Lp), io_dtype),
            jax.ShapeDtypeStruct((B, Lp), jnp.float32),
        ),
        grid_spec=pltpu.PrefetchScalarGridSpec(
            num_scalar_prefetch=0,
            grid=grid,
            in_specs=[
                pl.BlockSpec((tb, Cp, Lp), lambda i: (i, 0, 0)),   # x: batch-tiled
                pl.BlockSpec((Cp, Lp), lambda i: (0, 0)),          # W.T: resident in VMEM
                pl.BlockSpec((1, Lp), lambda i: (0, 0)),           # bias: resident in VMEM
            ],
            out_specs=[
                pl.BlockSpec((tb, Cp, Lp), lambda i: (i, 0, 0)),
                pl.BlockSpec((tb, Lp), lambda i: (i, 0)),
            ],
        ),
        compiler_params=pltpu.CompilerParams(
            dimension_semantics=("parallel",),
            vmem_limit_bytes=int(budget),
        ),
        cost_estimate=cost,
    )(x, wt, b)

    out = out_p[:, :C, :L]
    attn = attn_p[:, :L]
    return out, attn


def init_params(key, in_channels, seq_length):
    """Stacked weights/biases matching L x nn.Linear(in_channels, 1)."""
    kw, kb = jax.random.split(key)
    bound = 1.0 / jnp.sqrt(in_channels)
    W = jax.random.uniform(kw, (seq_length, in_channels), jnp.float32, -bound, bound)
    b = jax.random.uniform(kb, (seq_length,), jnp.float32, -bound, bound)
    return W, b


def reference_forward(x, weight, bias):
    """Pure-JAX mirror of the PyTorch Attention.forward (exact f32)."""
    xp = jnp.transpose(x, (0, 2, 1))                              # (B, L, C)
    logits = jnp.sum(xp * weight[None, :, :], axis=-1) + bias     # (B, L)
    attn = jax.nn.softmax(logits, axis=-1)
    out = jnp.transpose(xp * attn[:, :, None], (0, 2, 1))         # (B, C, L)
    return out, attn


if __name__ == "__main__":
    key = jax.random.PRNGKey(0)
    kx, kp, kx2 = jax.random.split(key, 3)

    # Small demo shape: (batch, in_channels, seq_length) — exact f32 path.
    B, C, L = 2, 4, 8
    x = jax.random.normal(kx, (B, C, L), jnp.float32)
    W, b = init_params(kp, C, L)

    out, attn = attention_forward(x, W, b)
    out = jax.block_until_ready(out)
    attn = jax.block_until_ready(attn)

    ref_out, ref_attn = reference_forward(x, W, b)
    assert out.shape == (B, C, L) and attn.shape == (B, L)
    assert jnp.allclose(out, ref_out, atol=1e-5, rtol=1e-5), "out mismatch"
    assert jnp.allclose(attn, ref_attn, atol=1e-5, rtol=1e-5), "attn mismatch"

    # Multi-grid-step + bf16 I/O path (loose tolerance: bf16 rounding + approx recip).
    B2, C2, L2 = 32, 8, 128
    x2 = jax.random.normal(kx2, (B2, C2, L2), jnp.float32)
    W2, b2 = init_params(jax.random.fold_in(kp, 1), C2, L2)
    out2, attn2 = attention_forward(x2, W2, b2, io_dtype=jnp.bfloat16, tb=8)
    out2 = jax.block_until_ready(out2)
    ref_out2, ref_attn2 = reference_forward(x2, W2, b2)
    assert jnp.allclose(out2.astype(jnp.float32), ref_out2, atol=1e-2, rtol=5e-2), \
        "out mismatch (bf16 tiled)"
    assert jnp.allclose(attn2, ref_attn2, atol=1e-2, rtol=5e-2), "attn mismatch (bf16 tiled)"

    print("KERNEL_OK")
</pallas_src>

<mosaic_0001>
module attributes {stable_mosaic.version = 11 : i64} {
  func.func @_attention_kernel(%arg0: i32, %arg1: memref<2x8x128xf32, #tpu.memory_space<vmem>>, %arg2: memref<8x128xf32, #tpu.memory_space<vmem>>, %arg3: memref<1x128xf32, #tpu.memory_space<vmem>>, %arg4: memref<2x8x128xf32, #tpu.memory_space<vmem>>, %arg5: memref<2x128xf32, #tpu.memory_space<vmem>>) attributes {dimension_semantics = [#tpu.dimension_semantics<parallel>], iteration_bounds = array<i64: 1>, scalar_prefetch = 0 : i64, scratch_operands = 0 : i64, tpu.core_type = #tpu.core_type<tc>, window_params = [{transform_indices = @transform_0, window_bounds = array<i64: 2, 8, 128>}, {pipeline_mode = #tpu.pipeline_mode<synchronous>, transform_indices = @transform_1, window_bounds = array<i64: 8, 128>}, {pipeline_mode = #tpu.pipeline_mode<synchronous>, transform_indices = @transform_2, window_bounds = array<i64: 1, 128>}, {transform_indices = @transform_3, window_bounds = array<i64: 2, 8, 128>}, {transform_indices = @transform_4, window_bounds = array<i64: 2, 128>}]} {
    %cst = arith.constant 0.000000e+00 : f32
    %0 = vector.broadcast %cst : f32 to vector<2x128xf32>
    %c0_i32 = arith.constant 0 : i32
    %c8_i32 = arith.constant 8 : i32
    %1 = arith.muli %c0_i32, %c8_i32 : i32
    %2 = tpu.assume_multiple %1, 8 : i32
    %c0 = arith.constant 0 : index
    %3 = arith.index_cast %2 : i32 to index
    %c0_0 = arith.constant 0 : index
    %4 = vector.load %arg1[%c0, %3, %c0_0] : memref<2x8x128xf32, #tpu.memory_space<vmem>>, vector<2x8x128xf32>
    %5 = arith.index_cast %2 : i32 to index
    %c0_1 = arith.constant 0 : index
    %6 = vector.load %arg2[%5, %c0_1] : memref<8x128xf32, #tpu.memory_space<vmem>>, vector<8x128xf32>
    %7 = vector.shape_cast %6 : vector<8x128xf32> to vector<1x8x128xf32>
    %8 = vector.broadcast %7 : vector<1x8x128xf32> to vector<2x8x128xf32>
    %9 = arith.mulf %4, %8 : vector<2x8x128xf32>
    %cst_2 = arith.constant dense<0.000000e+00> : vector<2x128xf32>
    %10 = vector.multi_reduction <add>, %9, %cst_2 [1] : vector<2x8x128xf32> to vector<2x128xf32>
    %11 = arith.addf %0, %10 : vector<2x128xf32>
    %c1_i32 = arith.constant 1 : i32
    %c0_3 = arith.constant 0 : index
    %c0_4 = arith.constant 0 : index
    %12 = vector.load %arg3[%c0_3, %c0_4] : memref<1x128xf32, #tpu.memory_space<vmem>>, vector<1x128xf32>
    %13 = vector.broadcast %12 : vector<1x128xf32> to vector<2x128xf32>
    %14 = arith.addf %11, %13 : vector<2x128xf32>
    %cst_5 = arith.constant dense<0xFF800000> : vector<2xf32>
    %15 = vector.multi_reduction <maximumf>, %14, %cst_5 [1] : vector<2x128xf32> to vector<2xf32>
    %16 = vector.shape_cast %15 : vector<2xf32> to vector<2x1xf32>
    %17 = vector.broadcast %16 : vector<2x1xf32> to vector<2x128xf32>
    %18 = arith.subf %14, %17 : vector<2x128xf32>
    %19 = math.exp %18 : vector<2x128xf32>
    %cst_6 = arith.constant dense<0.000000e+00> : vector<2xf32>
    %20 = vector.multi_reduction <add>, %19, %cst_6 [1] : vector<2x128xf32> to vector<2xf32>
    %21 = vector.shape_cast %20 : vector<2xf32> to vector<2x1xf32>
    %22 = vector.broadcast %21 : vector<2x1xf32> to vector<2x128xf32>
    %23 = arith.divf %19, %22 : vector<2x128xf32>
    %c0_7 = arith.constant 0 : index
    %c0_8 = arith.constant 0 : index
    %c0_9 = arith.constant 0 : index
    %24 = vector.load %arg1[%c0_7, %c0_8, %c0_9] : memref<2x8x128xf32, #tpu.memory_space<vmem>>, vector<2x8x128xf32>
    %25 = vector.shape_cast %23 : vector<2x128xf32> to vector<2x1x128xf32>
    %26 = vector.broadcast %25 : vector<2x1x128xf32> to vector<2x8x128xf32>
    %27 = arith.mulf %24, %26 : vector<2x8x128xf32>
    %c0_10 = arith.constant 0 : index
    %c0_11 = arith.constant 0 : index
    %c0_12 = arith.constant 0 : index
    %28 = vector.load %arg4[%c0_10, %c0_11, %c0_12] : memref<2x8x128xf32, #tpu.memory_space<vmem>>, vector<2x8x128xf32>
    tpu.vector_store %arg4[%c0_10, %c0_11, %c0_12], %27 {strides = array<i32>} : memref<2x8x128xf32, #tpu.memory_space<vmem>>, vector<2x8x128xf32>,
    %c0_13 = arith.constant 0 : index
    %c0_14 = arith.constant 0 : index
    %29 = vector.load %arg5[%c0_13, %c0_14] : memref<2x128xf32, #tpu.memory_space<vmem>>, vector<2x128xf32>
    tpu.vector_store %arg5[%c0_13, %c0_14], %23 {strides = array<i32>} : memref<2x128xf32, #tpu.memory_space<vmem>>, vector<2x128xf32>,
    return
  }
  func.func @transform_0(%arg0: i32) -> (i32, i32, i32) {
    %c0_i32 = arith.constant 0 : i32
    %c0_i32_0 = arith.constant 0 : i32
    %c0_i32_1 = arith.constant 0 : i32
    return %arg0, %c0_i32, %c0_i32_0 : i32, i32, i32
  }
  func.func @transform_1(%arg0: i32) -> (i32, i32) {
    %c0_i32 = arith.constant 0 : i32
    %c0_i32_0 = arith.constant 0 : i32
    %c0_i32_1 = arith.constant 0 : i32
    return %c0_i32, %c0_i32_0 : i32, i32
  }
  func.func @transform_2(%arg0: i32) -> (i32, i32) {
    %c0_i32 = arith.constant 0 : i32
    %c0_i32_0 = arith.constant 0 : i32
    %c0_i32_1 = arith.constant 0 : i32
    return %c0_i32, %c0_i32_0 : i32, i32
  }
  func.func @transform_3(%arg0: i32) -> (i32, i32, i32) {
    %c0_i32 = arith.constant 0 : i32
    %c0_i32_0 = arith.constant 0 : i32
    %c0_i32_1 = arith.constant 0 : i32
    return %arg0, %c0_i32, %c0_i32_0 : i32, i32, i32
  }
  func.func @transform_4(%arg0: i32) -> (i32, i32) {
    %c0_i32 = arith.constant 0 : i32
    %c0_i32_0 = arith.constant 0 : i32
    return %arg0, %c0_i32 : i32, i32
  }
}

</mosaic_0001>

<llo_original>
// kernel: tpu_custom_call.1
$region0: #{tpu_custom_call.1}
  #allocation0 [shape = 'u32[]', space=smem, size = 0x4, offset = 0x4, fixed_abs, tag = 'smem constant byte address 0x4 - core index']
  #allocation1 [shape = 'u32[144,128]{1,0:T(1,128)}', space=vmem, size = 0x12000, scoped, tag = 'internal scratch']
  %s0 = inlined_call_operand.hbm [shape: f32[2,8,128], index: 0, kind: input, shape index: {}]
  %s1 = inlined_call_operand.hbm [shape: f32[8,128], index: 1, kind: input, shape index: {}]
  %s2 = inlined_call_operand.vmem [shape: f32[1,128], index: 2, kind: input, shape index: {}]
  %s3 = inlined_call_operand.hbm [shape: f32[2,8,128], index: 3, kind: output, shape index: {0}]
  %s4 = inlined_call_operand.hbm [shape: f32[2,128], index: 4, kind: output, shape index: {1}]
  %5 = xla_tuple %s3, %s4
  %s6 = sld [smem:[#allocation0]]
  $region38: #{tpu_custom_call.1} parent=0
    _
  %s8 = ssub.s32 1, %s6
  %s9 = scalar_select 0, %s8, %s6
  $region1: #{tpu_custom_call.1} parent=0
    #allocation2 [shape = 'u8[8192]{0}', space=vmem, size = 0x2000, scoped, tag = 'input window, operand 0, single buffered']
    #allocation3 [shape = 's32[1]{0}', space=sflag, size = 0x4, scoped, tag = 'scoped memory for tpu_custom_call.1']
    #allocation4 [shape = 's32[1]{0}', space=sflag, size = 0x4, scoped, tag = 'scoped memory for tpu_custom_call.1']
    #allocation5 [shape = 'u8[4096]{0}', space=vmem, size = 0x1000, scoped, tag = 'input window, operand 1, single buffered']
    #allocation6 [shape = 's32[1]{0}', space=sflag, size = 0x4, scoped, tag = 'scoped memory for tpu_custom_call.1']
    #allocation7 [shape = 'u8[8192]{0}', space=vmem, size = 0x2000, scoped, tag = 'output window, operand 0, single buffered']
    #allocation8 [shape = 'u8[1024]{0}', space=vmem, size = 0x400, scoped, tag = 'output window, operand 1, single buffered']
    #allocation9 [shape = 's32[1]{0}', space=sflag, size = 0x4, scoped, tag = 'scoped memory for tpu_custom_call.1']
    %10 = vsyncpa [#allocation3], 0
    %11 = vsyncpa [#allocation6], 0
    %12 = vsyncpa [#allocation4], 0
    %13 = vsyncpa [#allocation9], 0
    // Predicated region
    $region2: #{tpu_custom_call.1} parent=1 // pred_check
      _
    $region3: #{tpu_custom_call.1} parent=1 // pred_check_branch
      %15 = sbr.rel (0) target = $region5
    $region4: #{tpu_custom_call.1} parent=1 // pred_region
      %s17 = ssub.s32 256, 256
      %18 = vsyncadd [#allocation3], %s17
      %s19 = sshll.u32 [#allocation2], 4
      %s20 = int_to_ptr.vmem [resolvable:$true] %s19
      %25 = dma.hbm_to_vmem [thread:$0]  %s0, 256, %s20, [#allocation3], 128, 128, 8
    $region5: #{tpu_custom_call.1} parent=1 // pred_fallthru
      _
    // Predicated region
    $region6: #{tpu_custom_call.1} parent=1 // pred_check
      _
    $region7: #{tpu_custom_call.1} parent=1 // pred_check_branch
      %27 = sbr.rel (0) target = $region9
    $region8: #{tpu_custom_call.1} parent=1 // pred_region
      %s29 = ssub.s32 128, 128
      %30 = vsyncadd [#allocation6], %s29
      %s32 = sshll.u32 [#allocation5], 4
      %s33 = int_to_ptr.vmem [resolvable:$true] %s32
      %35 = dma.hbm_to_vmem [thread:$0]  %s1, 128, %s33, [#allocation6]
    $region9: #{tpu_custom_call.1} parent=1 // pred_fallthru
      _
    // Predicated region
    $region10: #{tpu_custom_call.1} parent=1 // pred_check
      _
    $region11: #{tpu_custom_call.1} parent=1 // pred_check_branch
      %37 = sbr.rel (0) target = $region13
    $region12: #{tpu_custom_call.1} parent=1 // pred_region
      _
    $region13: #{tpu_custom_call.1} parent=1 // pred_fallthru
      _
    // Predicated region
    $region14: #{tpu_custom_call.1} parent=1 // pred_check
      _
    $region15: #{tpu_custom_call.1} parent=1 // pred_check_branch
      %39 = sbr.rel (0) target = $region17
    $region16: #{tpu_custom_call.1} parent=1 // pred_region
      %40 = dma.done [#allocation3], 256
    $region17: #{tpu_custom_call.1} parent=1 // pred_fallthru
      _
    // Predicated region
    $region18: #{tpu_custom_call.1} parent=1 // pred_check
      _
    $region19: #{tpu_custom_call.1} parent=1 // pred_check_branch
      %42 = sbr.rel (0) target = $region21
    $region20: #{tpu_custom_call.1} parent=1 // pred_region
      %43 = dma.done [#allocation6], 128
    $region21: #{tpu_custom_call.1} parent=1 // pred_fallthru
      _
    %v44 = vld [vmem:[#allocation2] sm:$0xff]
    %v45 = vld [vmem:[#allocation2 + $0x8] sm:$0xff]
    %v46 = vld [vmem:[#allocation5] sm:$0xff]
    %v47 = vmul.f32 %v44, %v46
    %v48 = vmul.f32 %v45, %v46
    %v49 = vrot.slane %v47, 4
    %v50 = vadd.f32 %v47, %v49
    %v51 = vrot.slane %v50, 2
    %v52 = vadd.f32 %v50, %v51
    %v53 = vrot.slane %v52, 1
    %v54 = vadd.f32 %v52, %v53
    %v55 = vrot.slane %v48, 4
    %v56 = vadd.f32 %v48, %v55
    %v57 = vrot.slane %v56, 2
    %v58 = vadd.f32 %v56, %v57
    %v59 = vrot.slane %v58, 1
    %v60 = vadd.f32 %v58, %v59
    %v61 = vadd.f32 %v54, 0.0
    %v62 = vadd.f32 %v60, 0.0
    %v63 = vld [vmem:[%s2] sm:$0x1]
    %v65 = vlaneseq
    %v66 = vshrl.u32 %v65, 7
    %v67 = vsub.s32 0, %v66
    %v68 = vrot.slane %v63, %v67
    %v70 = vadd.f32 %v61, %v68
    %v71 = vadd.f32 %v62, %v68
    %v74 = vrot.slane %v71, 7
    %vm75 = vcmask 1041409
    %v76 = vsel %vm75, %v74, %v70
    %vm78 = vcmask 1041408
    %v79 = vsel %vm78, %v76, -inf
    %80 = vmax.xlane.f32.xlu0 %v79
    %v81 = vpop.xlane.xlu0 %80
    %v83 = vrot.slane %v81, 1
    %v86 = vsub.f32 %v70, %v81
    %v87 = vsub.f32 %v71, %v83
    %v88 = vmul.f32 %v86, 1.442695
    %v89 = vpow.pop %v88
    %v90 = vmul.f32 %v87, 1.442695
    %v91 = vpow.pop %v90
    %v94 = vrot.slane %v91, 7
    %v95 = vsel %vm75, %v94, %v89
    %v97 = vsel %vm78, %v95, 0.0
    %98 = vadd.xlane.f32.xlu0 %v97
    %v99 = vpop.xlane.xlu0 %98
    %v101 = vrot.slane %v99, 1
    %v104 = vrcp.pop %v99
    %v105 = vmul.f32 %v89, %v104
    %v106 = vrcp.pop %v101
    %v107 = vmul.f32 %v91, %v106
    %v108 = vld [vmem:[#allocation2] sm:$0xff]
    %v109 = vld [vmem:[#allocation2 + $0x8] sm:$0xff]
    %v110 = vlaneseq
    %v111 = vshrl.u32 %v110, 7
    %v112 = vsub.s32 0, %v111
    %v113 = vrot.slane %v105, %v112
    %v114 = vlaneseq
    %v115 = vshrl.u32 %v114, 7
    %v116 = vsub.s32 0, %v115
    %v117 = vrot.slane %v107, %v116
    %v118 = vmul.f32 %v108, %v113
    %v119 = vmul.f32 %v109, %v117
    %120 = vst [vmem:[#allocation7] sm:$0xff] %v118
    %121 = vst [vmem:[#allocation7 + $0x8] sm:$0xff] %v119
    %v124 = vrot.slane %v107, 7
    %v125 = vsel %vm75, %v124, %v105
    %127 = vst [vmem:[#allocation8] sm:$0x3] %v125
    // Predicated region
    $region22: #{tpu_custom_call.1} parent=1 // pred_check
      _
    $region23: #{tpu_custom_call.1} parent=1 // pred_check_branch
      %129 = sbr.rel (0) target = $region25
    $region24: #{tpu_custom_call.1} parent=1 // pred_region
      %s131 = ssub.s32 256, 256
      %132 = vsyncadd [#allocation4], %s131
      %s133 = sshll.u32 [#allocation7], 4
      %s134 = int_to_ptr.vmem [resolvable:$true] %s133
      %139 = dma.vmem_to_hbm [thread:$0]  %s134, 256, %s3, [#allocation4], 128, 128, 8
    $region25: #{tpu_custom_call.1} parent=1 // pred_fallthru
      _
    // Predicated region
    $region26: #{tpu_custom_call.1} parent=1 // pred_check
      _
    $region27: #{tpu_custom_call.1} parent=1 // pred_check_branch
      %141 = sbr.rel (0) target = $region29
    $region28: #{tpu_custom_call.1} parent=1 // pred_region
      %s143 = ssub.s32 32, 32
      %144 = vsyncadd [#allocation9], %s143
      %s146 = sshll.u32 [#allocation8], 4
      %s147 = int_to_ptr.vmem [resolvable:$true] %s146
      %149 = dma.vmem_to_hbm [thread:$0]  %s147, 32, %s4, [#allocation9]
    $region29: #{tpu_custom_call.1} parent=1 // pred_fallthru
      _
    // Predicated region
    $region30: #{tpu_custom_call.1} parent=1 // pred_check
      _
    $region31: #{tpu_custom_call.1} parent=1 // pred_check_branch
      %151 = sbr.rel (0) target = $region33
    $region32: #{tpu_custom_call.1} parent=1 // pred_region
      %152 = dma.done [#allocation4], 256
    $region33: #{tpu_custom_call.1} parent=1 // pred_fallthru
      _
    // Predicated region
    $region34: #{tpu_custom_call.1} parent=1 // pred_check
      _
    $region35: #{tpu_custom_call.1} parent=1 // pred_check_branch
      %154 = sbr.rel (0) target = $region37
    $region36: #{tpu_custom_call.1} parent=1 // pred_region
      %155 = dma.done [#allocation9], 32
    $region37: #{tpu_custom_call.1} parent=1 // pred_fallthru
      _
    %156 = vsyncpa [#allocation3], 1
    %157 = vsyncpa [#allocation6], 1
    %158 = vsyncpa [#allocation4], 1
    %159 = vsyncpa [#allocation9], 1

</llo_original>
